<compile_context>
chip_gen: v6e
topology: v6e:2x2x1
jax: 0.10.0
libtpu: 0.0.40
codegen_flags: <defaults>
</compile_context>

<pallas_src>
import math

import jax
import jax.numpy as jnp
from jax.experimental import pallas as pl
from jax.experimental.pallas import tpu as pltpu


def _round_up(x, m):
    return ((x + m - 1) // m) * m


# --------------------------------------------------------------------------- #
# Kernel
# --------------------------------------------------------------------------- #
def _linear_decoder_kernel(x_ref, w_ref, b_ref, o_ref):
    # x_ref: (tile_b, F)      bf16 batch tile (resident across the N axis)
    # w_ref: (F, tile_n)      bf16 flattened per-channel weights tile
    # b_ref: (1, tile_n)      f32 bias tile
    # o_ref: (tile_b, tile_n) f32 lane-dense output tile
    o_ref[...] = (
        jnp.dot(x_ref[...], w_ref[...], preferred_element_type=jnp.float32)
        + b_ref[...]
    )


# --------------------------------------------------------------------------- #
# One-time parameter preparation (hoisted out of the forward pass)
# --------------------------------------------------------------------------- #
def prepare_decoder_params(w, b):
    """Fold (C, F, L) weights + (C, L) bias into kernel-ready flattened form.

    Done ONCE at init: channel-major flatten to (F, C*L), pad only the total
    column count to a lane multiple, cast weights to bf16 (bias stays f32).
    """
    C, F, L = w.shape
    n = C * L
    # Pad total columns: to 128 for small N, to 512 for large N so a 512-wide
    # N tile divides it evenly on big problems.
    n_pad = _round_up(n, 128) if n <= 512 else _round_up(n, 512)

    w_flat = jnp.transpose(w, (1, 0, 2)).reshape(F, n)          # (F, C*L)
    w_flat = jnp.pad(w_flat, ((0, 0), (0, n_pad - n))).astype(jnp.bfloat16)
    b_flat = jnp.pad(b.reshape(1, n), ((0, 0), (0, n_pad - n))).astype(jnp.float32)

    return {"w_flat": w_flat, "b_flat": b_flat, "out_ch": C, "out_len": L}


# --------------------------------------------------------------------------- #
# Forward
# --------------------------------------------------------------------------- #
def linear_decoder(x, prepared):
    """x: (B, F) float32.  prepared: output of prepare_decoder_params."""
    w = prepared["w_flat"]          # (F, N_pad) bf16
    b = prepared["b_flat"]          # (1, N_pad) f32
    C = prepared["out_ch"]
    L = prepared["out_len"]

    B, F = x.shape
    F_w, n_pad = w.shape
    assert F == F_w, "feature dim mismatch between x and folded weights"

    # bf16 activations: halves x HBM/DMA traffic, native MXU path.
    x = x.astype(jnp.bfloat16)

    # Batch tiling: full batch (no padding) when it fits a single tile,
    # otherwise 128-row tiles (enough for the MXU on every generation).
    if B <= 256:
        tile_b, b_pad = B, B
    else:
        tile_b = 128
        b_pad = _round_up(B, tile_b)
        x = jnp.pad(x, ((0, b_pad - B), (0, 0)))

    # N tiling: full width when small, else 512-wide tiles (n_pad is then a
    # multiple of 512 by construction in prepare_decoder_params).
    tile_n = n_pad if n_pad <= 512 else 512

    grid = (b_pad // tile_b, n_pad // tile_n)

    out = pl.pallas_call(
        _linear_decoder_kernel,
        out_shape=jax.ShapeDtypeStruct((b_pad, n_pad), jnp.float32),
        grid_spec=pltpu.PrefetchScalarGridSpec(
            num_scalar_prefetch=0,
            grid=grid,
            in_specs=[
                # x tile: constant along the inner (N) axis -> one DMA per
                # batch tile, VMEM-resident while the W tiles stream through.
                pl.BlockSpec((tile_b, F), lambda i, j: (i, 0)),
                # W / bias tiles: streamed along the inner axis.
                pl.BlockSpec((F, tile_n), lambda i, j: (0, j)),
                pl.BlockSpec((1, tile_n), lambda i, j: (0, j)),
            ],
            out_specs=pl.BlockSpec((tile_b, tile_n), lambda i, j: (i, j)),
        ),
        compiler_params=pltpu.CompilerParams(
            # Batch-major leading parallel axis so v7x's two TensorCores can
            # shard work even with out_ch == 1; both axes are independent.
            dimension_semantics=("parallel", "parallel"),
        ),
    )(x, w, b)

    # (B_pad, N_pad) -> (B, C, L): strip batch/lane padding, un-flatten channels.
    return out[:B, : C * L].reshape(B, C, L)


# --------------------------------------------------------------------------- #
# Torch-equivalent init (decompose folded exactly at init time)
# --------------------------------------------------------------------------- #
def init_params(key, input_feature_dim, output_length, out_ch=1, decompose=False):
    """nn.Linear-style init, folded into (C, F, L) weight + (C, L) bias.

    decompose=True (two Linears on the two halves of x, summed) folds exactly:
    W_c = concat(W1_c.T, W2_c.T, axis=0),  b_c = b1_c + b2_c.
    """
    def torch_linear(k, fan_in, fan_out):
        kw, kb = jax.random.split(k)
        bound = 1.0 / math.sqrt(fan_in)
        wt = jax.random.uniform(kw, (fan_in, fan_out), jnp.float32, -bound, bound)
        bt = jax.random.uniform(kb, (fan_out,), jnp.float32, -bound, bound)
        return wt, bt

    ws, bs = [], []
    keys = jax.random.split(key, out_ch)
    if decompose:
        assert input_feature_dim % 2 == 0
        half = input_feature_dim // 2
        for i in range(out_ch):
            k1, k2 = jax.random.split(keys[i])
            w1, b1 = torch_linear(k1, half, output_length)
            w2, b2 = torch_linear(k2, half, output_length)
            ws.append(jnp.concatenate([w1, w2], axis=0))   # (F, L)
            bs.append(b1 + b2)
    else:
        for i in range(out_ch):
            w1, b1 = torch_linear(keys[i], input_feature_dim, output_length)
            ws.append(w1)
            bs.append(b1)
    return {"w": jnp.stack(ws, axis=0), "b": jnp.stack(bs, axis=0)}


def reference_forward_f32(x, params):
    """Pure-JAX f32 reference of the module forward (decompose already folded)."""
    return jnp.einsum("bf,cfl->bcl", x, params["w"]) + params["b"][None, :, :]


def reference_forward_bf16(x, params):
    """Reference using the kernel's arithmetic (bf16 inputs, f32 accumulate)."""
    xb = x.astype(jnp.bfloat16)
    wb = params["w"].astype(jnp.bfloat16)
    out = jnp.einsum("bf,cfl->bcl", xb, wb, preferred_element_type=jnp.float32)
    return out + params["b"][None, :, :].astype(jnp.float32)


if __name__ == "__main__":
    key = jax.random.PRNGKey(0)
    kp, kx = jax.random.split(key)

    # Small shapes consistent with the module: x is [Batch, feature_dim],
    # output is [Batch, out_ch, output_length].  decompose=True exercises the
    # two-Linear fold.
    batch, input_feature_dim, output_length, out_ch = 4, 64, 48, 3
    decompose = True

    params = init_params(kp, input_feature_dim, output_length, out_ch, decompose)
    prepared = prepare_decoder_params(params["w"], params["b"])   # one-time prep
    x = jax.random.normal(kx, (batch, input_feature_dim), jnp.float32)

    out = jax.block_until_ready(linear_decoder(x, prepared))
    assert out.shape == (batch, out_ch, output_length), out.shape

    # Tight check against a reference using the same bf16-input / f32-accumulate
    # arithmetic as the kernel.
    ref_match = reference_forward_bf16(x, params)
    assert jnp.allclose(out, ref_match, atol=1e-3, rtol=1e-3), "mismatch vs bf16 reference"

    # Looser sanity check against the strict f32 module semantics (bounds the
    # bf16 cast error).
    ref_f32 = reference_forward_f32(x, params)
    assert jnp.allclose(out, ref_f32, atol=3e-2, rtol=3e-2), "mismatch vs f32 reference"

    print("KERNEL_OK")
</pallas_src>

<mosaic_0001>
module attributes {stable_mosaic.version = 11 : i64} {
  func.func @_linear_decoder_kernel(%arg0: i32, %arg1: i32, %arg2: memref<4x64xbf16, #tpu.memory_space<vmem>>, %arg3: memref<64x256xbf16, #tpu.memory_space<vmem>>, %arg4: memref<1x256xf32, #tpu.memory_space<vmem>>, %arg5: memref<4x256xf32, #tpu.memory_space<vmem>>) attributes {dimension_semantics = [#tpu.dimension_semantics<parallel>, #tpu.dimension_semantics<parallel>], iteration_bounds = array<i64: 1, 1>, scalar_prefetch = 0 : i64, scratch_operands = 0 : i64, tpu.core_type = #tpu.core_type<tc>, window_params = [{transform_indices = @transform_0, window_bounds = array<i64: 4, 64>}, {transform_indices = @transform_1, window_bounds = array<i64: 64, 256>}, {transform_indices = @transform_2, window_bounds = array<i64: 1, 256>}, {transform_indices = @transform_3, window_bounds = array<i64: 4, 256>}]} {
    %c0 = arith.constant 0 : index
    %c0_0 = arith.constant 0 : index
    %0 = vector.load %arg2[%c0, %c0_0] : memref<4x64xbf16, #tpu.memory_space<vmem>>, vector<4x64xbf16>
    %c0_1 = arith.constant 0 : index
    %c0_2 = arith.constant 0 : index
    %1 = vector.load %arg3[%c0_1, %c0_2] : memref<64x256xbf16, #tpu.memory_space<vmem>>, vector<64x256xbf16>
    %cst = arith.constant dense<0.000000e+00> : vector<4x256xf32>
    %2 = tpu.matmul %0, %1, %cst {dimension_numbers = #tpu.dot_dimension_numbers<[1], [0], [0], [1], [0, 0, 1, 1], [], []>} : vector<4x64xbf16>, vector<64x256xbf16>, vector<4x256xf32> -> vector<4x256xf32>
    %c0_3 = arith.constant 0 : index
    %c0_4 = arith.constant 0 : index
    %3 = vector.load %arg4[%c0_3, %c0_4] : memref<1x256xf32, #tpu.memory_space<vmem>>, vector<1x256xf32>
    %4 = vector.broadcast %3 : vector<1x256xf32> to vector<4x256xf32>
    %5 = arith.addf %2, %4 : vector<4x256xf32>
    %c0_5 = arith.constant 0 : index
    %c0_6 = arith.constant 0 : index
    %6 = vector.load %arg5[%c0_5, %c0_6] : memref<4x256xf32, #tpu.memory_space<vmem>>, vector<4x256xf32>
    tpu.vector_store %arg5[%c0_5, %c0_6], %5 {strides = array<i32>} : memref<4x256xf32, #tpu.memory_space<vmem>>, vector<4x256xf32>,
    return
  }
  func.func @transform_0(%arg0: i32, %arg1: i32) -> (i32, i32) {
    %c0_i32 = arith.constant 0 : i32
    %c0_i32_0 = arith.constant 0 : i32
    return %arg0, %c0_i32 : i32, i32
  }
  func.func @transform_1(%arg0: i32, %arg1: i32) -> (i32, i32) {
    %c0_i32 = arith.constant 0 : i32
    %c0_i32_0 = arith.constant 0 : i32
    return %c0_i32, %arg1 : i32, i32
  }
  func.func @transform_2(%arg0: i32, %arg1: i32) -> (i32, i32) {
    %c0_i32 = arith.constant 0 : i32
    %c0_i32_0 = arith.constant 0 : i32
    return %c0_i32, %arg1 : i32, i32
  }
  func.func @transform_3(%arg0: i32, %arg1: i32) -> (i32, i32) {
    %c0_i32 = arith.constant 0 : i32
    return %arg0, %arg1 : i32, i32
  }
}

</mosaic_0001>

<llo_original>
// kernel: tpu_custom_call.1
$region0: #{tpu_custom_call.1}
  #allocation0 [shape = 'u32[]', space=smem, size = 0x4, offset = 0x4, fixed_abs, tag = 'smem constant byte address 0x4 - core index']
  #allocation1 [shape = 'u32[144,128]{1,0:T(1,128)}', space=vmem, size = 0x12000, scoped, tag = 'internal scratch']
  %s0 = inlined_call_operand.hbm [shape: bf16[4,64], index: 0, kind: input, shape index: {}]
  %s1 = inlined_call_operand.hbm [shape: bf16[64,256], index: 1, kind: input, shape index: {}]
  %s2 = inlined_call_operand.vmem [shape: f32[1,256], index: 2, kind: input, shape index: {}]
  %s3 = inlined_call_operand.hbm [shape: f32[4,256], index: 3, kind: output, shape index: {}]
  %s4 = sld [smem:[#allocation0]]
  $region30: #{tpu_custom_call.1} parent=0
    _
  %s6 = ssub.s32 1, %s4
  %s7 = scalar_select 0, %s6, %s4
  $region1: #{tpu_custom_call.1} parent=0
    #allocation2 [shape = 'u8[1024]{0}', space=vmem, size = 0x400, scoped, tag = 'input window, operand 0, single buffered']
    #allocation3 [shape = 's32[1]{0}', space=sflag, size = 0x4, scoped, tag = 'scoped memory for tpu_custom_call.1']
    #allocation4 [shape = 's32[1]{0}', space=sflag, size = 0x4, scoped, tag = 'scoped memory for tpu_custom_call.1']
    #allocation5 [shape = 'u8[32768]{0}', space=vmem, size = 0x8000, scoped, tag = 'input window, operand 1, single buffered']
    #allocation6 [shape = 's32[1]{0}', space=sflag, size = 0x4, scoped, tag = 'scoped memory for tpu_custom_call.1']
    #allocation7 [shape = 'u8[4096]{0}', space=vmem, size = 0x1000, scoped, tag = 'output window, operand 0, single buffered']
    %8 = vsyncpa [#allocation3], 0
    %9 = vsyncpa [#allocation6], 0
    %10 = vsyncpa [#allocation4], 0
    // Predicated region
    $region2: #{tpu_custom_call.1} parent=1 // pred_check
      _
    $region3: #{tpu_custom_call.1} parent=1 // pred_check_branch
      %12 = sbr.rel (0) target = $region5
    $region4: #{tpu_custom_call.1} parent=1 // pred_region
      %s14 = ssub.s32 32, 32
      %15 = vsyncadd [#allocation3], %s14
      %s17 = sshll.u32 [#allocation2], 4
      %s18 = int_to_ptr.vmem [resolvable:$true] %s17
      %20 = dma.hbm_to_vmem [thread:$0]  %s0, 32, %s18, [#allocation3]
    $region5: #{tpu_custom_call.1} parent=1 // pred_fallthru
      _
    // Predicated region
    $region6: #{tpu_custom_call.1} parent=1 // pred_check
      _
    $region7: #{tpu_custom_call.1} parent=1 // pred_check_branch
      %22 = sbr.rel (0) target = $region9
    $region8: #{tpu_custom_call.1} parent=1 // pred_region
      %s24 = ssub.s32 1024, 1024
      %25 = vsyncadd [#allocation6], %s24
      %s26 = sshll.u32 [#allocation5], 4
      %s27 = int_to_ptr.vmem [resolvable:$true] %s26
      %32 = dma.hbm_to_vmem [thread:$0]  %s1, 1024, %s27, [#allocation6], 128, 128, 8
    $region9: #{tpu_custom_call.1} parent=1 // pred_fallthru
      _
    // Predicated region
    $region10: #{tpu_custom_call.1} parent=1 // pred_check
      _
    $region11: #{tpu_custom_call.1} parent=1 // pred_check_branch
      %34 = sbr.rel (0) target = $region13
    $region12: #{tpu_custom_call.1} parent=1 // pred_region
      _
    $region13: #{tpu_custom_call.1} parent=1 // pred_fallthru
      _
    // Predicated region
    $region14: #{tpu_custom_call.1} parent=1 // pred_check
      _
    $region15: #{tpu_custom_call.1} parent=1 // pred_check_branch
      %36 = sbr.rel (0) target = $region17
    $region16: #{tpu_custom_call.1} parent=1 // pred_region
      %37 = dma.done [#allocation3], 32
    $region17: #{tpu_custom_call.1} parent=1 // pred_fallthru
      _
    // Predicated region
    $region18: #{tpu_custom_call.1} parent=1 // pred_check
      _
    $region19: #{tpu_custom_call.1} parent=1 // pred_check_branch
      %39 = sbr.rel (0) target = $region21
    $region20: #{tpu_custom_call.1} parent=1 // pred_region
      %40 = dma.done [#allocation6], 1024
    $region21: #{tpu_custom_call.1} parent=1 // pred_fallthru
      _
    %v42 = vld [vmem:[#allocation2] sm:$0x3]
    %v43 = vld [vmem:[#allocation5] sm:$0xff]
    %v44 = vld [vmem:[#allocation5 + $0x8] sm:$0xff]
    %v45 = vld [vmem:[#allocation5 + $0x10] sm:$0xff]
    %v46 = vld [vmem:[#allocation5 + $0x18] sm:$0xff]
    %v47 = vld [vmem:[#allocation5 + $0x20] sm:$0xff]
    %v48 = vld [vmem:[#allocation5 + $0x28] sm:$0xff]
    %v49 = vld [vmem:[#allocation5 + $0x30] sm:$0xff]
    %v50 = vld [vmem:[#allocation5 + $0x38] sm:$0xff]
    %v51 = vld [vmem:[%s2] sm:$0x3]
    %v53 = vlaneseq
    %v54 = vshrl.u32 %v53, 7
    %v55 = vsub.s32 0, %v54
    %v56 = vrot.slane %v51, %v55
    %v57 = vlaneseq
    %v58 = vshrl.u32 %v57, 7
    %v59 = vsub.s32 1, %v58
    %v60 = vrot.slane %v51, %v59
    %v71 = vunpack.c.l.b16 %v43
    %v72 = vunpack.c.h.b16 %v43
    %v73 = vunpack.c.l.b16 %v44
    %v74 = vunpack.c.h.b16 %v44
    %v75 = vunpack.c.l.b16 %v45
    %v76 = vunpack.c.h.b16 %v45
    %v77 = vunpack.c.l.b16 %v46
    %v78 = vunpack.c.h.b16 %v46
    %v79 = vunpack.c.l.b16 %v47
    %v80 = vunpack.c.h.b16 %v47
    %v81 = vunpack.c.l.b16 %v48
    %v82 = vunpack.c.h.b16 %v48
    %v83 = vunpack.c.l.b16 %v49
    %v84 = vunpack.c.h.b16 %v49
    %v85 = vunpack.c.l.b16 %v50
    %v86 = vunpack.c.h.b16 %v50
    %v87 = vpack.c.b16 %v73, %v71
    %v88 = vpack.c.b16 %v74, %v72
    %v89 = vpack.c.b16 %v77, %v75
    %v90 = vpack.c.b16 %v78, %v76
    %v91 = vpack.c.b16 %v81, %v79
    %v92 = vpack.c.b16 %v82, %v80
    %v93 = vpack.c.b16 %v85, %v83
    %v94 = vpack.c.b16 %v86, %v84
    %vm103 = vcmask 523264
    %v105 = vsel %vm103, %v42, 0
    %107 = vmatprep.subr.bf16.mxu0 0
    %108 = vmatpush1.bf16.msra.mxu0 0
    %109 = vmatprep.subr.bf16.mxu0 0
    %110 = vmatpush1.bf16.msra.mxu0 0
    %111 = vmatprep.subr.bf16.mxu0 0
    %112 = vmatpush1.bf16.msra.mxu0 0
    %113 = vmatprep.subr.bf16.mxu0 0
    %114 = vmatpush1.bf16.msra.mxu0 0
    %115 = vmatprep.subr.bf16.mxu0 %v94
    %116 = vmatpush1.bf16.msra.mxu0 %v93
    %117 = vmatprep.subr.bf16.mxu0 %v92
    %118 = vmatpush1.bf16.msra.mxu0 %v91
    %119 = vmatprep.subr.bf16.mxu0 %v90
    %120 = vmatpush1.bf16.msra.mxu0 %v89
    %121 = vmatprep.subr.bf16.mxu0 %v88
    %122 = vmatpush1.bf16.msra.mxu0 %v87
    %123 = vmatprep.subr.bf16.mxu0 0
    %124 = vmatpush2.bf16.msra.mxu0 0
    %125 = vmatprep.subr.bf16.mxu0 0
    %126 = vmatpush2.bf16.msra.mxu0 0
    %127 = vmatprep.subr.bf16.mxu0 0
    %128 = vmatpush2.bf16.msra.mxu0 0
    %129 = vmatprep.subr.bf16.mxu0 0
    %130 = vmatpush2.bf16.msra.mxu0 0
    %131 = vmatprep.subr.bf16.mxu0 0
    %132 = vmatpush2.bf16.msra.mxu0 0
    %133 = vmatprep.subr.bf16.mxu0 0
    %134 = vmatpush2.bf16.msra.mxu0 0
    %135 = vmatprep.subr.bf16.mxu0 0
    %136 = vmatpush2.bf16.msra.mxu0 0
    %137 = vmatprep.subr.bf16.mxu0 0
    %138 = vmatpush2.bf16.msra.mxu0 0
    %139 = vmatprep.mubr.bf16.mxu0 0
    %140 = vmatmul.mubr.bf16.gmra.mxu0 %v105
    %v141 = vpop.f32.mrf.mxu0
    %v142 = vadd.f32 %v56, %v141
    %v143 = vpop.f32.mrf.mxu0
    %v144 = vadd.f32 %v60, %v143
    %v145 = vpop.f32.mrf.mxu0
    %v146 = vpop.f32.mrf.mxu0
    %147 = vdwg.mxu0
    %v150 = vcombine.low %v142, %v144
    %152 = vst [vmem:[#allocation7] sm:$0xff] %v150
    // Predicated region
    $region22: #{tpu_custom_call.1} parent=1 // pred_check
      _
    $region23: #{tpu_custom_call.1} parent=1 // pred_check_branch
      %154 = sbr.rel (0) target = $region25
    $region24: #{tpu_custom_call.1} parent=1 // pred_region
      %s156 = ssub.s32 128, 128
      %157 = vsyncadd [#allocation4], %s156
      %s159 = sshll.u32 [#allocation7], 4
      %s160 = int_to_ptr.vmem [resolvable:$true] %s159
      %162 = dma.vmem_to_hbm [thread:$0]  %s160, 128, %s3, [#allocation4]
    $region25: #{tpu_custom_call.1} parent=1 // pred_fallthru
      _
    // Predicated region
    $region26: #{tpu_custom_call.1} parent=1 // pred_check
      _
    $region27: #{tpu_custom_call.1} parent=1 // pred_check_branch
      %164 = sbr.rel (0) target = $region29
    $region28: #{tpu_custom_call.1} parent=1 // pred_region
      %165 = dma.done [#allocation4], 128
    $region29: #{tpu_custom_call.1} parent=1 // pred_fallthru
      _
    %166 = vsyncpa [#allocation3], 1
    %167 = vsyncpa [#allocation6], 1
    %168 = vsyncpa [#allocation4], 1

</llo_original>
